<compile_context>
chip_gen: v7x
topology: tpu7x:2x2x1
jax: 0.10.0
libtpu: 0.0.40
codegen_flags: <defaults>
</compile_context>

<pallas_src>
import functools
import math

import jax
import jax.numpy as jnp
from jax import lax
from jax.experimental import pallas as pl
from jax.experimental.pallas import tpu as pltpu

TAU = 0.5  # config.temperature (deterministic, set in-script)

_MAX_BLOCK_ROWS = 512  # ~64 KiB per f32 input block at C=32; well under VMEM


def _first_argmax_one_hot(vals, dtype):
    """One-hot of the FIRST maximum along the last axis (matches torch argmax tie-break)."""
    c = vals.shape[-1]
    m = jnp.max(vals, axis=-1, keepdims=True)
    iota = lax.broadcasted_iota(jnp.int32, vals.shape, len(vals.shape) - 1)
    idx = jnp.min(jnp.where(vals == m, iota, c), axis=-1, keepdims=True)
    return (iota == idx).astype(dtype)


def _gumbel_hard_kernel(x_ref, g_ref, o_ref, *, inv_tau):
    # Forward value of hard gumbel-softmax == one-hot of argmax of perturbed logits.
    logits = (x_ref[...].astype(jnp.float32) + g_ref[...]) * inv_tau
    o_ref[...] = _first_argmax_one_hot(logits, o_ref.dtype)


def _argmax_one_hot_kernel(x_ref, o_ref):
    o_ref[...] = _first_argmax_one_hot(x_ref[...].astype(jnp.float32), o_ref.dtype)


def _row_tiling(rows):
    """Pick a row tile (multiple of 8) and the padded row count it implies."""
    block_rows = min(_MAX_BLOCK_ROWS, ((rows + 7) // 8) * 8)
    rows_padded = ((rows + block_rows - 1) // block_rows) * block_rows
    return block_rows, rows_padded


def gumbel_softmax(x, *, tau=TAU, training=True, seed=0):
    """Pallas implementation of GumbelSoftmax.forward (forward values only)."""
    orig_shape = x.shape
    c = orig_shape[-1]
    rows = math.prod(orig_shape[:-1])
    x2 = x.reshape(rows, c)

    block_rows, rows_padded = _row_tiling(rows)
    if rows_padded != rows:
        x2 = jnp.pad(x2, ((0, rows_padded - rows), (0, 0)))
    grid = (rows_padded // block_rows,)
    spec = pl.BlockSpec((block_rows, c), lambda i: (i, 0))
    params = pltpu.CompilerParams(dimension_semantics=("parallel",))

    if training:
        # Gumbel(0,1) noise generated in the wrapper (portable; no in-kernel PRNG).
        key = jax.random.PRNGKey(seed)
        g = jax.random.gumbel(key, (rows_padded, c), dtype=jnp.float32)
        out = pl.pallas_call(
            functools.partial(_gumbel_hard_kernel, inv_tau=1.0 / float(tau)),
            out_shape=jax.ShapeDtypeStruct((rows_padded, c), x.dtype),
            grid=grid,
            in_specs=[spec, spec],
            out_specs=spec,
            compiler_params=params,
        )(x2, g)
    else:
        out = pl.pallas_call(
            _argmax_one_hot_kernel,
            out_shape=jax.ShapeDtypeStruct((rows_padded, c), x.dtype),
            grid=grid,
            in_specs=[spec],
            out_specs=spec,
            compiler_params=params,
        )(x2)

    if rows_padded != rows:
        out = out[:rows]
    return out.reshape(orig_shape)


if __name__ == "__main__":
    key = jax.random.PRNGKey(0)
    # (batch=2, seq=8, classes=32); softmax/argmax over the last axis.
    x = jax.random.normal(key, (2, 8, 32), dtype=jnp.float32)

    # Training branch (gumbel-softmax, hard=True): output is exactly one-hot.
    y_train = gumbel_softmax(x, tau=TAU, training=True, seed=1234)
    y_train = jax.block_until_ready(y_train)
    assert y_train.shape == x.shape and y_train.dtype == x.dtype
    assert bool(jnp.all(jnp.sum(y_train, axis=-1) == 1.0))
    assert bool(jnp.all(jnp.max(y_train, axis=-1) == 1.0))
    assert bool(jnp.all((y_train == 0.0) | (y_train == 1.0)))

    # Training branch matches a pure-JAX reference (same noise, same key logic).
    g_ref = jax.random.gumbel(jax.random.PRNGKey(1234), (2 * 8, 32), dtype=jnp.float32)
    logits_ref = (x.reshape(16, 32) + g_ref) / TAU
    ref_train = jax.nn.one_hot(jnp.argmax(logits_ref, axis=-1), 32, dtype=x.dtype)
    assert bool(jnp.array_equal(y_train.reshape(16, 32), ref_train))

    # Eval branch (one_hot of argmax) — check against a pure-JAX reference.
    y_eval = gumbel_softmax(x, training=False)
    y_eval = jax.block_until_ready(y_eval)
    ref_eval = jax.nn.one_hot(jnp.argmax(x, axis=-1), x.shape[-1], dtype=x.dtype)
    assert bool(jnp.array_equal(y_eval, ref_eval))

    # Non-multiple-of-8 row count exercises the padding path.
    x_odd = jax.random.normal(jax.random.PRNGKey(2), (3, 5, 32), dtype=jnp.float32)
    y_odd = jax.block_until_ready(gumbel_softmax(x_odd, training=False))
    ref_odd = jax.nn.one_hot(jnp.argmax(x_odd, axis=-1), 32, dtype=x_odd.dtype)
    assert bool(jnp.array_equal(y_odd, ref_odd))

    print("KERNEL_OK")
</pallas_src>

<mosaic_0001>
module attributes {stable_mosaic.version = 11 : i64} {
  func.func @_gumbel_hard_kernel(%arg0: i32, %arg1: memref<16x32xf32, #tpu.memory_space<vmem>>, %arg2: memref<16x32xf32, #tpu.memory_space<vmem>>, %arg3: memref<16x32xf32, #tpu.memory_space<vmem>>) attributes {dimension_semantics = [#tpu.dimension_semantics<parallel>], iteration_bounds = array<i64: 1>, scalar_prefetch = 0 : i64, scratch_operands = 0 : i64, tpu.core_type = #tpu.core_type<tc>, window_params = [{transform_indices = @transform_0, window_bounds = array<i64: 16, 32>}, {transform_indices = @transform_1, window_bounds = array<i64: 16, 32>}, {transform_indices = @transform_2, window_bounds = array<i64: 16, 32>}]} {
    %c0 = arith.constant 0 : index
    %c0_0 = arith.constant 0 : index
    %0 = vector.load %arg1[%c0, %c0_0] : memref<16x32xf32, #tpu.memory_space<vmem>>, vector<16x32xf32>
    %c0_1 = arith.constant 0 : index
    %c0_2 = arith.constant 0 : index
    %1 = vector.load %arg2[%c0_1, %c0_2] : memref<16x32xf32, #tpu.memory_space<vmem>>, vector<16x32xf32>
    %2 = arith.addf %0, %1 : vector<16x32xf32>
    %cst = arith.constant 2.000000e+00 : f32
    %3 = vector.broadcast %cst : f32 to vector<16x32xf32>
    %4 = arith.mulf %2, %3 : vector<16x32xf32>
    %cst_3 = arith.constant dense<0xFF800000> : vector<16xf32>
    %5 = vector.multi_reduction <maximumf>, %4, %cst_3 [1] : vector<16x32xf32> to vector<16xf32>
    %6 = vector.shape_cast %5 : vector<16xf32> to vector<16x1xf32>
    %7 = tpu.iota {dimensions = array<i32: 1>} : vector<16x32xi32>
    %8 = vector.broadcast %6 : vector<16x1xf32> to vector<16x32xf32>
    %9 = arith.cmpf oeq, %4, %8 : vector<16x32xf32>
    %c32_i32 = arith.constant 32 : i32
    %10 = vector.broadcast %c32_i32 : i32 to vector<16x32xi32>
    %11 = arith.select %9, %7, %10 : vector<16x32xi1>, vector<16x32xi32>
    %cst_4 = arith.constant dense<2147483647> : vector<16xi32>
    %12 = vector.multi_reduction <minsi>, %11, %cst_4 [1] : vector<16x32xi32> to vector<16xi32>
    %13 = vector.shape_cast %12 : vector<16xi32> to vector<16x1xi32>
    %14 = vector.broadcast %13 : vector<16x1xi32> to vector<16x32xi32>
    %15 = arith.cmpi eq, %7, %14 : vector<16x32xi32>
    %16 = arith.extui %15 : vector<16x32xi1> to vector<16x32xi32>
    %17 = arith.sitofp %16 : vector<16x32xi32> to vector<16x32xf32>
    %c0_5 = arith.constant 0 : index
    %c0_6 = arith.constant 0 : index
    %18 = vector.load %arg3[%c0_5, %c0_6] : memref<16x32xf32, #tpu.memory_space<vmem>>, vector<16x32xf32>
    tpu.vector_store %arg3[%c0_5, %c0_6], %17 {strides = array<i32>} : memref<16x32xf32, #tpu.memory_space<vmem>>, vector<16x32xf32>,
    return
  }
  func.func @transform_0(%arg0: i32) -> (i32, i32) {
    %c0_i32 = arith.constant 0 : i32
    %c0_i32_0 = arith.constant 0 : i32
    return %arg0, %c0_i32 : i32, i32
  }
  func.func @transform_1(%arg0: i32) -> (i32, i32) {
    %c0_i32 = arith.constant 0 : i32
    %c0_i32_0 = arith.constant 0 : i32
    return %arg0, %c0_i32 : i32, i32
  }
  func.func @transform_2(%arg0: i32) -> (i32, i32) {
    %c0_i32 = arith.constant 0 : i32
    %c0_i32_0 = arith.constant 0 : i32
    return %arg0, %c0_i32 : i32, i32
  }
}

</mosaic_0001>

<llo_original>
// kernel: tpu_custom_call.1
$region0: #{tpu_custom_call.1}
  #allocation0 [shape = 'u32[]', space=smem, size = 0x4, offset = 0x4, fixed_abs, tag = 'smem constant byte address 0x4 - core index']
  #allocation1 [shape = 'u32[144,128]{1,0:T(1,128)}', space=vmem, size = 0x12000, scoped, tag = 'internal scratch']
  %s0 = inlined_call_operand.hbm [shape: f32[16,32], index: 0, kind: input, shape index: {}]
  %s1 = inlined_call_operand.hbm [shape: f32[16,32], index: 1, kind: input, shape index: {}]
  %s2 = inlined_call_operand.hbm [shape: f32[16,32], index: 2, kind: output, shape index: {}]
  %s3 = sld [smem:[#allocation0]]
  $region26: #{tpu_custom_call.1} parent=0
    _
  %s5 = ssub.s32 1, %s3
  %s6 = scalar_select 0, %s5, %s3
  $region1: #{tpu_custom_call.1} parent=0
    #allocation2 [shape = 'u8[8192]{0}', space=vmem, size = 0x2000, scoped, tag = 'input window, operand 0, single buffered']
    #allocation3 [shape = 's32[1]{0}', space=sflag, size = 0x4, scoped, tag = 'scoped memory for tpu_custom_call.1']
    #allocation4 [shape = 's32[1]{0}', space=sflag, size = 0x4, scoped, tag = 'scoped memory for tpu_custom_call.1']
    #allocation5 [shape = 'u8[8192]{0}', space=vmem, size = 0x2000, scoped, tag = 'input window, operand 1, single buffered']
    #allocation6 [shape = 's32[1]{0}', space=sflag, size = 0x4, scoped, tag = 'scoped memory for tpu_custom_call.1']
    #allocation7 [shape = 'u8[8192]{0}', space=vmem, size = 0x2000, scoped, tag = 'output window, operand 0, single buffered']
    %7 = vsyncpa [#allocation3], 0
    %8 = vsyncpa [#allocation6], 0
    %9 = vsyncpa [#allocation4], 0
    // Predicated region
    $region2: #{tpu_custom_call.1} parent=1 // pred_check
      _
    $region3: #{tpu_custom_call.1} parent=1 // pred_check_branch
      %11 = sbr.rel (0) target = $region5
    $region4: #{tpu_custom_call.1} parent=1 // pred_region
      %s13 = ssub.s32 256, 256
      %14 = vsyncadd [#allocation3], %s13
      %s15 = sshll.u32 [#allocation2], 4
      %s16 = int_to_ptr.vmem [resolvable:$true] %s15
      %21 = dma.hbm_to_vmem [thread:$0]  %s0, 256, %s16, [#allocation3], 128, 128, 8
    $region5: #{tpu_custom_call.1} parent=1 // pred_fallthru
      _
    // Predicated region
    $region6: #{tpu_custom_call.1} parent=1 // pred_check
      _
    $region7: #{tpu_custom_call.1} parent=1 // pred_check_branch
      %23 = sbr.rel (0) target = $region9
    $region8: #{tpu_custom_call.1} parent=1 // pred_region
      %s25 = ssub.s32 256, 256
      %26 = vsyncadd [#allocation6], %s25
      %s27 = sshll.u32 [#allocation5], 4
      %s28 = int_to_ptr.vmem [resolvable:$true] %s27
      %33 = dma.hbm_to_vmem [thread:$0]  %s1, 256, %s28, [#allocation6], 128, 128, 8
    $region9: #{tpu_custom_call.1} parent=1 // pred_fallthru
      _
    // Predicated region
    $region10: #{tpu_custom_call.1} parent=1 // pred_check
      _
    $region11: #{tpu_custom_call.1} parent=1 // pred_check_branch
      %35 = sbr.rel (0) target = $region13
    $region12: #{tpu_custom_call.1} parent=1 // pred_region
      %36 = dma.done [#allocation3], 256
    $region13: #{tpu_custom_call.1} parent=1 // pred_fallthru
      _
    // Predicated region
    $region14: #{tpu_custom_call.1} parent=1 // pred_check
      _
    $region15: #{tpu_custom_call.1} parent=1 // pred_check_branch
      %38 = sbr.rel (0) target = $region17
    $region16: #{tpu_custom_call.1} parent=1 // pred_region
      %39 = dma.done [#allocation6], 256
    $region17: #{tpu_custom_call.1} parent=1 // pred_fallthru
      _
    %v40 = vld [vmem:[#allocation2] sm:$0xff]
    %v41 = vld [vmem:[#allocation2 + $0x8] sm:$0xff]
    %v42 = vld [vmem:[#allocation5] sm:$0xff]
    %v43 = vld [vmem:[#allocation5 + $0x8] sm:$0xff]
    %v44 = vadd.f32 %v40, %v42
    %v45 = vadd.f32 %v41, %v43
    %v46 = vmul.f32 %v44, 2.0
    %v47 = vmul.f32 %v45, 2.0
    %vm48 = vcmask 261120
    %v49 = vsel %vm48, %v46, -inf
    %50 = vmax.xlane.f32.xlu0 %v49
    %v51 = vpop.xlane.xlu0 %50
    %v52 = vsel %vm48, %v47, -inf
    %53 = vmax.xlane.f32.xlu0 %v52
    %v54 = vpop.xlane.xlu0 %53
    %v55 = vlaneseq
    %v56 = vand.u32 %v55, 127
    %vm57 = vcmp.eq.f32.partialorder %v46, %v51
    %vm58 = vcmp.eq.f32.partialorder %v47, %v54
    %v59 = vsel %vm57, %v56, 32
    %v60 = vsel %vm58, %v56, 32
    %v61 = vsel %vm48, %v59, 2147483647
    %v62 = vand.u32 %v61, 65535
    %v63 = vshra.s32 %v61, 16
    %v64 = vcvt.s32.f32 %v62
    %v65 = vcvt.s32.f32 %v63
    %66 = vmin.xlane.f32.xlu0 %v65
    %v67 = vpop.xlane.xlu0 %66
    %vm68 = vcmp.eq.f32.partialorder %v65, %v67
    %v69 = vsel %vm68, %v64, inf
    %70 = vmin.xlane.f32.xlu0 %v69
    %v71 = vpop.xlane.xlu0 %70
    %v72 = vcvt.f32.s32 %v71
    %v73 = vcvt.f32.s32 %v67
    %v74 = vshll.u32 %v73, 16
    %v75 = vadd.s32 %v74, %v72
    %v76 = vsel %vm48, %v60, 2147483647
    %v77 = vand.u32 %v76, 65535
    %v78 = vshra.s32 %v76, 16
    %v79 = vcvt.s32.f32 %v77
    %v80 = vcvt.s32.f32 %v78
    %81 = vmin.xlane.f32.xlu0 %v80
    %v82 = vpop.xlane.xlu0 %81
    %vm83 = vcmp.eq.f32.partialorder %v80, %v82
    %v84 = vsel %vm83, %v79, inf
    %85 = vmin.xlane.f32.xlu0 %v84
    %v86 = vpop.xlane.xlu0 %85
    %v87 = vcvt.f32.s32 %v86
    %v88 = vcvt.f32.s32 %v82
    %v89 = vshll.u32 %v88, 16
    %v90 = vadd.s32 %v89, %v87
    %vm91 = vcmp.eq.s32.totalorder %v56, %v75
    %vm92 = vcmp.eq.s32.totalorder %v56, %v90
    %v93 = vsel %vm91, 1, 0
    %v94 = vsel %vm92, 1, 0
    %v95 = vcvt.s32.f32 %v93
    %v96 = vcvt.s32.f32 %v94
    %97 = vst.msk [vmem:[#allocation7] sm:$0xff] %vm48, %v95
    %98 = vst.msk [vmem:[#allocation7 + $0x8] sm:$0xff] %vm48, %v96
    // Predicated region
    $region18: #{tpu_custom_call.1} parent=1 // pred_check
      _
    $region19: #{tpu_custom_call.1} parent=1 // pred_check_branch
      %100 = sbr.rel (0) target = $region21
    $region20: #{tpu_custom_call.1} parent=1 // pred_region
      %s102 = ssub.s32 256, 256
      %103 = vsyncadd [#allocation4], %s102
      %s104 = sshll.u32 [#allocation7], 4
      %s105 = int_to_ptr.vmem [resolvable:$true] %s104
      %110 = dma.vmem_to_hbm [thread:$0]  %s105, 256, %s2, [#allocation4], 128, 128, 8
    $region21: #{tpu_custom_call.1} parent=1 // pred_fallthru
      _
    // Predicated region
    $region22: #{tpu_custom_call.1} parent=1 // pred_check
      _
    $region23: #{tpu_custom_call.1} parent=1 // pred_check_branch
      %112 = sbr.rel (0) target = $region25
    $region24: #{tpu_custom_call.1} parent=1 // pred_region
      %113 = dma.done [#allocation4], 256
    $region25: #{tpu_custom_call.1} parent=1 // pred_fallthru
      _
    %114 = vsyncpa [#allocation3], 1
    %115 = vsyncpa [#allocation6], 1
    %116 = vsyncpa [#allocation4], 1

</llo_original>
